<compile_context>
chip_gen: v6e
topology: v6e:2x2x1
jax: 0.10.0
libtpu: 0.0.40
codegen_flags: <defaults>
</compile_context>

<pallas_src>
import functools

import jax
import jax.numpy as jnp
from jax.experimental import pallas as pl
from jax.experimental.pallas import tpu as pltpu


def _round_up(x: int, m: int) -> int:
    return ((x + m - 1) // m) * m


def _cdiv(a: int, b: int) -> int:
    return (a + b - 1) // b


def _fit_tile(dim: int, max_tile: int, align: int):
    """Pick (tile, padded_dim): choose the number of grid steps first, then the
    smallest aligned tile that covers `dim` in that many steps (minimal pad)."""
    dim_aligned = _round_up(dim, align)
    max_tile = min(_round_up(max_tile, align), dim_aligned)
    steps = _cdiv(dim_aligned, max_tile)
    tile = _round_up(_cdiv(dim, steps), align)
    return tile, steps * tile


def _linear_relu_kernel_f32(x_ref, w_ref, b_ref, o_ref):
    """f32-output variant: o_ref itself is the f32 accumulator (no scratch)."""
    k = pl.program_id(2)
    prod = jnp.dot(x_ref[...], w_ref[...], preferred_element_type=jnp.float32)

    @pl.when(k == 0)
    def _first():
        o_ref[...] = prod  # no separate zero-init store

    @pl.when(k > 0)
    def _accum():
        o_ref[...] += prod

    @pl.when(k == pl.num_programs(2) - 1)
    def _epilogue():
        o_ref[...] = jnp.maximum(o_ref[...] + b_ref[...], 0.0)


def _linear_relu_kernel_acc(x_ref, w_ref, b_ref, o_ref, acc_ref):
    """Generic variant with an f32 VMEM scratch accumulator (non-f32 outputs)."""
    k = pl.program_id(2)
    prod = jnp.dot(x_ref[...], w_ref[...], preferred_element_type=jnp.float32)

    @pl.when(k == 0)
    def _first():
        acc_ref[...] = prod

    @pl.when(k > 0)
    def _accum():
        acc_ref[...] += prod

    @pl.when(k == pl.num_programs(2) - 1)
    def _epilogue():
        o_ref[...] = jnp.maximum(acc_ref[...] + b_ref[...], 0.0).astype(o_ref.dtype)


@functools.partial(jax.jit, static_argnames=("tm", "tn", "tk", "compute_dtype"))
def my_linear(x, weight, bias, *, tm=512, tn=512, tk=1024,
              compute_dtype=jnp.bfloat16):
    """Pallas implementation of MyLinear.forward: relu(x @ weight + bias).

    compute_dtype: dtype X/W are streamed/multiplied in (default bf16 = MXU
    native rate, half the HBM bytes). Accumulation, bias add and relu stay f32.
    Pass compute_dtype=None to keep the original input dtype on the MXU.
    """
    M, K = x.shape
    Kw, N = weight.shape
    assert K == Kw
    out_dtype = x.dtype

    if compute_dtype is not None:
        x = x.astype(compute_dtype)
        weight = weight.astype(compute_dtype)

    in_bytes = x.dtype.itemsize
    out_bytes = jnp.dtype(out_dtype).itemsize
    out_is_f32 = jnp.dtype(out_dtype) == jnp.dtype(jnp.float32)

    # (8, 128)-legal, lane-dense tiles with minimal padding.
    tm, M_pad = _fit_tile(M, tm, 8)
    tn, N_pad = _fit_tile(N, tn, 128)
    tk, K_pad = _fit_tile(K, tk, 128)

    # v7x has 2 TensorCores: make sure the parallel (M, N) part of the grid has
    # at least 2 tiles when the problem allows it, so both cores get work.
    if (M_pad // tm) * (N_pad // tn) == 1 and M_pad >= 16:
        tm = _round_up(_cdiv(M_pad, 2), 8)
        M_pad = 2 * tm

    # Zero-pad only when needed (zeros are inert for matmul; padded output rows
    # and cols are sliced off below).
    if M_pad != M or K_pad != K:
        x = jnp.pad(x, ((0, M_pad - M), (0, K_pad - K)))
    if K_pad != K or N_pad != N:
        weight = jnp.pad(weight, ((0, K_pad - K), (0, N_pad - N)))
    b_p = jnp.pad(bias.astype(jnp.float32), (0, N_pad - N)).reshape(1, N_pad)

    grid = (M_pad // tm, N_pad // tn, K_pad // tk)
    n_i, n_j = grid[0], grid[1]

    if out_is_f32:
        kernel = _linear_relu_kernel_f32
        scratch_shapes = []
        acc_bytes = 0
    else:
        kernel = _linear_relu_kernel_acc
        scratch_shapes = [pltpu.VMEM((tm, tn), jnp.float32)]
        acc_bytes = tm * tn * 4

    # Double-buffered tiles + (optional) accumulator; 2x headroom, capped so it
    # always fits v7x's 64 MiB VMEM per TensorCore.
    vmem_est = (
        2 * tm * tk * in_bytes        # x tiles
        + 2 * tk * tn * in_bytes      # w tiles
        + 2 * tn * 4                  # bias tiles
        + 2 * tm * tn * out_bytes     # output tiles
        + acc_bytes
    )
    vmem_limit = int(min(48 * (1 << 20), max(2 * vmem_est, 8 * (1 << 20))))

    # Advisory estimate of the *tiled* traffic (X re-streamed per N tile, W
    # re-streamed per M tile).
    cost = pl.CostEstimate(
        flops=2 * M_pad * K_pad * N_pad,
        transcendentals=0,
        bytes_accessed=(
            M_pad * K_pad * in_bytes * n_j
            + K_pad * N_pad * in_bytes * n_i
            + N_pad * 4 * n_i
            + M_pad * N_pad * out_bytes
        ),
    )

    out = pl.pallas_call(
        kernel,
        out_shape=jax.ShapeDtypeStruct((M_pad, N_pad), out_dtype),
        grid_spec=pltpu.PrefetchScalarGridSpec(
            num_scalar_prefetch=0,
            grid=grid,
            in_specs=[
                pl.BlockSpec((tm, tk), lambda i, j, k: (i, k)),   # X
                pl.BlockSpec((tk, tn), lambda i, j, k: (k, j)),   # W
                pl.BlockSpec((1, tn), lambda i, j, k: (0, j)),    # bias (K-invariant)
            ],
            out_specs=pl.BlockSpec((tm, tn), lambda i, j, k: (i, j)),
            scratch_shapes=scratch_shapes,
        ),
        compiler_params=pltpu.CompilerParams(
            dimension_semantics=("parallel", "parallel", "arbitrary"),
            vmem_limit_bytes=vmem_limit,
        ),
        cost_estimate=cost,
    )(x, weight, b_p)

    return out[:M, :N]


def _bf16_ref(x, w, b):
    """Reference matching the bf16 compute path (bf16 operands, f32 accumulate)."""
    xb = x.astype(jnp.bfloat16)
    wb = w.astype(jnp.bfloat16)
    lin = jnp.matmul(xb, wb, preferred_element_type=jnp.float32) + b
    return jnp.maximum(lin, 0.0)


if __name__ == "__main__":
    key = jax.random.PRNGKey(0)
    k_x, k_w, k_b, k_x2, k_w2, k_b2 = jax.random.split(key, 6)

    # ---- Small shape matching the original MyLinear demo ----
    batch, in_units, units = 8, 32, 64
    weight = jax.random.normal(k_w, (in_units, units), dtype=jnp.float32)
    bias = jax.random.normal(k_b, (units,), dtype=jnp.float32)
    x = jax.random.normal(k_x, (batch, in_units), dtype=jnp.float32)

    # f32 compute path: exact vs. f32 reference.
    out_f32 = my_linear(x, weight, bias, compute_dtype=None)
    jax.block_until_ready(out_f32)
    ref_f32 = jnp.maximum(x @ weight + bias, 0.0)
    assert out_f32.shape == (batch, units)
    assert jnp.allclose(out_f32, ref_f32, atol=1e-5, rtol=1e-5)

    # Default bf16 compute path: compare against a matching bf16 reference.
    out_bf = my_linear(x, weight, bias)
    jax.block_until_ready(out_bf)
    assert jnp.allclose(out_bf, _bf16_ref(x, weight, bias), atol=1e-3, rtol=1e-3)

    # ---- Larger, non-aligned shape: exercises tile fitting, megacore M split ----
    M2, K2, N2 = 300, 600, 300
    w2 = jax.random.normal(k_w2, (K2, N2), dtype=jnp.float32)
    b2 = jax.random.normal(k_b2, (N2,), dtype=jnp.float32)
    x2 = jax.random.normal(k_x2, (M2, K2), dtype=jnp.float32)

    out2_f32 = my_linear(x2, w2, b2, compute_dtype=None)
    jax.block_until_ready(out2_f32)
    ref2_f32 = jnp.maximum(x2 @ w2 + b2, 0.0)
    assert out2_f32.shape == (M2, N2)
    assert jnp.allclose(out2_f32, ref2_f32, atol=1e-3, rtol=1e-4)

    out2_bf = my_linear(x2, w2, b2)
    jax.block_until_ready(out2_bf)
    assert jnp.allclose(out2_bf, _bf16_ref(x2, w2, b2), atol=2e-3, rtol=2e-3)

    # ---- Force a multi-step (M, N, K) grid to exercise the K accumulation ----
    out3 = my_linear(x2, w2, b2, tm=128, tn=128, tk=256, compute_dtype=None)
    jax.block_until_ready(out3)
    assert jnp.allclose(out3, ref2_f32, atol=1e-3, rtol=1e-4)

    print("KERNEL_OK")
</pallas_src>

<mosaic_0001>
module attributes {stable_mosaic.version = 11 : i64} {
  func.func @_linear_relu_kernel_f32(%arg0: i32, %arg1: i32, %arg2: i32, %arg3: memref<8x128xf32, #tpu.memory_space<vmem>>, %arg4: memref<128x128xf32, #tpu.memory_space<vmem>>, %arg5: memref<1x128xf32, #tpu.memory_space<vmem>>, %arg6: memref<8x128xf32, #tpu.memory_space<vmem>>) attributes {dimension_semantics = [#tpu.dimension_semantics<parallel>, #tpu.dimension_semantics<parallel>, #tpu.dimension_semantics<arbitrary>], iteration_bounds = array<i64: 1, 1, 1>, scalar_prefetch = 0 : i64, scratch_operands = 0 : i64, tpu.core_type = #tpu.core_type<tc>, window_params = [{transform_indices = @transform_0, window_bounds = array<i64: 8, 128>}, {transform_indices = @transform_1, window_bounds = array<i64: 128, 128>}, {transform_indices = @transform_2, window_bounds = array<i64: 1, 128>}, {transform_indices = @transform_3, window_bounds = array<i64: 8, 128>}]} {
    %c0 = arith.constant 0 : index
    %c0_0 = arith.constant 0 : index
    %0 = vector.load %arg3[%c0, %c0_0] : memref<8x128xf32, #tpu.memory_space<vmem>>, vector<8x128xf32>
    %c0_1 = arith.constant 0 : index
    %c0_2 = arith.constant 0 : index
    %1 = vector.load %arg4[%c0_1, %c0_2] : memref<128x128xf32, #tpu.memory_space<vmem>>, vector<128x128xf32>
    %cst = arith.constant dense<0.000000e+00> : vector<8x128xf32>
    %2 = tpu.matmul %0, %1, %cst {dimension_numbers = #tpu.dot_dimension_numbers<[1], [0], [0], [1], [0, 0, 1, 1], [], []>} : vector<8x128xf32>, vector<128x128xf32>, vector<8x128xf32> -> vector<8x128xf32>
    %c0_i32 = arith.constant 0 : i32
    %3 = arith.cmpi eq, %arg2, %c0_i32 : i32
    %4 = arith.extui %3 : i1 to i32
    %c0_i32_3 = arith.constant 0 : i32
    %5 = arith.cmpi ne, %4, %c0_i32_3 : i32
    scf.if %5 {
      %c0_8 = arith.constant 0 : index
      %c0_9 = arith.constant 0 : index
      %12 = vector.load %arg6[%c0_8, %c0_9] : memref<8x128xf32, #tpu.memory_space<vmem>>, vector<8x128xf32>
      tpu.vector_store %arg6[%c0_8, %c0_9], %2 {strides = array<i32>} : memref<8x128xf32, #tpu.memory_space<vmem>>, vector<8x128xf32>,
    } else {
    }
    %c0_i32_4 = arith.constant 0 : i32
    %6 = arith.cmpi sgt, %arg2, %c0_i32_4 : i32
    %7 = arith.extui %6 : i1 to i32
    %c0_i32_5 = arith.constant 0 : i32
    %8 = arith.cmpi ne, %7, %c0_i32_5 : i32
    scf.if %8 {
      %c0_8 = arith.constant 0 : index
      %c0_9 = arith.constant 0 : index
      %12 = vector.load %arg6[%c0_8, %c0_9] : memref<8x128xf32, #tpu.memory_space<vmem>>, vector<8x128xf32>
      %13 = arith.addf %12, %2 : vector<8x128xf32>
      %c0_10 = arith.constant 0 : index
      %c0_11 = arith.constant 0 : index
      %14 = vector.load %arg6[%c0_10, %c0_11] : memref<8x128xf32, #tpu.memory_space<vmem>>, vector<8x128xf32>
      tpu.vector_store %arg6[%c0_10, %c0_11], %13 {strides = array<i32>} : memref<8x128xf32, #tpu.memory_space<vmem>>, vector<8x128xf32>,
    } else {
    }
    %c0_i32_6 = arith.constant 0 : i32
    %9 = arith.cmpi eq, %arg2, %c0_i32_6 : i32
    %10 = arith.extui %9 : i1 to i32
    %c0_i32_7 = arith.constant 0 : i32
    %11 = arith.cmpi ne, %10, %c0_i32_7 : i32
    scf.if %11 {
      %c0_8 = arith.constant 0 : index
      %c0_9 = arith.constant 0 : index
      %12 = vector.load %arg6[%c0_8, %c0_9] : memref<8x128xf32, #tpu.memory_space<vmem>>, vector<8x128xf32>
      %c0_10 = arith.constant 0 : index
      %c0_11 = arith.constant 0 : index
      %13 = vector.load %arg5[%c0_10, %c0_11] : memref<1x128xf32, #tpu.memory_space<vmem>>, vector<1x128xf32>
      %14 = vector.broadcast %13 : vector<1x128xf32> to vector<8x128xf32>
      %15 = arith.addf %12, %14 : vector<8x128xf32>
      %cst_12 = arith.constant 0.000000e+00 : f32
      %16 = vector.broadcast %cst_12 : f32 to vector<8x128xf32>
      %17 = arith.maximumf %15, %16 : vector<8x128xf32>
      %c0_13 = arith.constant 0 : index
      %c0_14 = arith.constant 0 : index
      %18 = vector.load %arg6[%c0_13, %c0_14] : memref<8x128xf32, #tpu.memory_space<vmem>>, vector<8x128xf32>
      tpu.vector_store %arg6[%c0_13, %c0_14], %17 {strides = array<i32>} : memref<8x128xf32, #tpu.memory_space<vmem>>, vector<8x128xf32>,
    } else {
    }
    return
  }
  func.func @transform_0(%arg0: i32, %arg1: i32, %arg2: i32) -> (i32, i32) {
    %c0_i32 = arith.constant 0 : i32
    return %arg0, %arg2 : i32, i32
  }
  func.func @transform_1(%arg0: i32, %arg1: i32, %arg2: i32) -> (i32, i32) {
    %c0_i32 = arith.constant 0 : i32
    return %arg2, %arg1 : i32, i32
  }
  func.func @transform_2(%arg0: i32, %arg1: i32, %arg2: i32) -> (i32, i32) {
    %c0_i32 = arith.constant 0 : i32
    %c0_i32_0 = arith.constant 0 : i32
    return %c0_i32, %arg1 : i32, i32
  }
  func.func @transform_3(%arg0: i32, %arg1: i32, %arg2: i32) -> (i32, i32) {
    %c0_i32 = arith.constant 0 : i32
    return %arg0, %arg1 : i32, i32
  }
}

</mosaic_0001>

<llo_original>
// kernel: my_linear.1
$region0: #{my_linear.1}
  #allocation0 [shape = 'u32[]', space=smem, size = 0x4, offset = 0x4, fixed_abs, tag = 'smem constant byte address 0x4 - core index']
  #allocation1 [shape = 'u32[144,128]{1,0:T(1,128)}', space=vmem, size = 0x12000, scoped, tag = 'internal scratch']
  %s0 = inlined_call_operand.vmem [shape: f32[8,128], index: 0, kind: input, shape index: {}]
  %s1 = inlined_call_operand.vmem [shape: f32[128,128], index: 1, kind: input, shape index: {}]
  %s2 = inlined_call_operand.vmem [shape: f32[1,128], index: 2, kind: input, shape index: {}]
  %s3 = inlined_call_operand.hbm [shape: f32[8,128], index: 3, kind: output, shape index: {}]
  %s4 = sld [smem:[#allocation0]]
  $region34: #{my_linear.1} parent=0
    _
  %s6 = ssub.s32 1, %s4
  %s7 = scalar_select 0, %s6, %s4
  $region1: #{my_linear.1} parent=0
    #allocation2 [shape = 'u8[4096]{0}', space=vmem, size = 0x1000, scoped, tag = 'output window, operand 0, single buffered']
    #allocation3 [shape = 's32[1]{0}', space=sflag, size = 0x4, scoped, tag = 'scoped memory for my_linear.1']
    %8 = vsyncpa [#allocation3], 0
    // Predicated region
    $region2: #{my_linear.1} parent=1 // pred_check
      _
    $region3: #{my_linear.1} parent=1 // pred_check_branch
      %10 = sbr.rel (0) target = $region5
    $region4: #{my_linear.1} parent=1 // pred_region
      _
    $region5: #{my_linear.1} parent=1 // pred_fallthru
      _
    // Predicated region
    $region6: #{my_linear.1} parent=1 // pred_check
      _
    $region7: #{my_linear.1} parent=1 // pred_check_branch
      %12 = sbr.rel (0) target = $region9
    $region8: #{my_linear.1} parent=1 // pred_region
      _
    $region9: #{my_linear.1} parent=1 // pred_fallthru
      _
    // Predicated region
    $region10: #{my_linear.1} parent=1 // pred_check
      _
    $region11: #{my_linear.1} parent=1 // pred_check_branch
      %14 = sbr.rel (0) target = $region13
    $region12: #{my_linear.1} parent=1 // pred_region
      _
    $region13: #{my_linear.1} parent=1 // pred_fallthru
      _
    %v15 = vld [vmem:[%s0] sm:$0xff]
    %v16 = vld [vmem:[%s1] sm:$0xff]
    %v17 = vld [vmem:[%s1 + $0x8] sm:$0xff]
    %v18 = vld [vmem:[%s1 + $0x10] sm:$0xff]
    %v19 = vld [vmem:[%s1 + $0x18] sm:$0xff]
    %v20 = vld [vmem:[%s1 + $0x20] sm:$0xff]
    %v21 = vld [vmem:[%s1 + $0x28] sm:$0xff]
    %v22 = vld [vmem:[%s1 + $0x30] sm:$0xff]
    %v23 = vld [vmem:[%s1 + $0x38] sm:$0xff]
    %v24 = vld [vmem:[%s1 + $0x40] sm:$0xff]
    %v25 = vld [vmem:[%s1 + $0x48] sm:$0xff]
    %v26 = vld [vmem:[%s1 + $0x50] sm:$0xff]
    %v27 = vld [vmem:[%s1 + $0x58] sm:$0xff]
    %v28 = vld [vmem:[%s1 + $0x60] sm:$0xff]
    %v29 = vld [vmem:[%s1 + $0x68] sm:$0xff]
    %v30 = vld [vmem:[%s1 + $0x70] sm:$0xff]
    %v31 = vld [vmem:[%s1 + $0x78] sm:$0xff]
    %32 = vmatprep.subr.mxu0 0.0
    %33 = vmatpush1.msra.mxu0 %v31
    %34 = vmatprep.subr.mxu0 0.0
    %35 = vmatpush1.msra.mxu0 %v30
    %36 = vmatprep.subr.mxu0 0.0
    %37 = vmatpush1.msra.mxu0 %v29
    %38 = vmatprep.subr.mxu0 0.0
    %39 = vmatpush1.msra.mxu0 %v28
    %40 = vmatprep.subr.mxu0 0.0
    %41 = vmatpush1.msra.mxu0 %v27
    %42 = vmatprep.subr.mxu0 0.0
    %43 = vmatpush1.msra.mxu0 %v26
    %44 = vmatprep.subr.mxu0 0.0
    %45 = vmatpush1.msra.mxu0 %v25
    %46 = vmatprep.subr.mxu0 0.0
    %47 = vmatpush1.msra.mxu0 %v24
    %48 = vmatprep.subr.mxu0 0.0
    %49 = vmatpush1.msra.mxu0 %v23
    %50 = vmatprep.subr.mxu0 0.0
    %51 = vmatpush1.msra.mxu0 %v22
    %52 = vmatprep.subr.mxu0 0.0
    %53 = vmatpush1.msra.mxu0 %v21
    %54 = vmatprep.subr.mxu0 0.0
    %55 = vmatpush1.msra.mxu0 %v20
    %56 = vmatprep.subr.mxu0 0.0
    %57 = vmatpush1.msra.mxu0 %v19
    %58 = vmatprep.subr.mxu0 0.0
    %59 = vmatpush1.msra.mxu0 %v18
    %60 = vmatprep.subr.mxu0 0.0
    %61 = vmatpush1.msra.mxu0 %v17
    %62 = vmatprep.subr.mxu0 0.0
    %63 = vmatpush1.msra.mxu0 %v16
    %64 = vmatprep.subr.mxu0 0.0
    %65 = vmatpush2.msra.mxu0 0.0
    %66 = vmatprep.subr.mxu0 0.0
    %67 = vmatpush2.msra.mxu0 0.0
    %68 = vmatprep.subr.mxu0 0.0
    %69 = vmatpush2.msra.mxu0 0.0
    %70 = vmatprep.subr.mxu0 0.0
    %71 = vmatpush2.msra.mxu0 0.0
    %72 = vmatprep.subr.mxu0 0.0
    %73 = vmatpush2.msra.mxu0 0.0
    %74 = vmatprep.subr.mxu0 0.0
    %75 = vmatpush2.msra.mxu0 0.0
    %76 = vmatprep.subr.mxu0 0.0
    %77 = vmatpush2.msra.mxu0 0.0
    %78 = vmatprep.subr.mxu0 0.0
    %79 = vmatpush2.msra.mxu0 0.0
    %80 = vmatprep.subr.mxu0 0.0
    %81 = vmatpush2.msra.mxu0 0.0
    %82 = vmatprep.subr.mxu0 0.0
    %83 = vmatpush2.msra.mxu0 0.0
    %84 = vmatprep.subr.mxu0 0.0
    %85 = vmatpush2.msra.mxu0 0.0
    %86 = vmatprep.subr.mxu0 0.0
    %87 = vmatpush2.msra.mxu0 0.0
    %88 = vmatprep.subr.mxu0 0.0
    %89 = vmatpush2.msra.mxu0 0.0
    %90 = vmatprep.subr.mxu0 0.0
    %91 = vmatpush2.msra.mxu0 0.0
    %92 = vmatprep.subr.mxu0 0.0
    %93 = vmatpush2.msra.mxu0 0.0
    %94 = vmatprep.subr.mxu0 0.0
    %95 = vmatpush2.msra.mxu0 0.0
    %96 = vmatprep.mubr.f32.mxu0 0.0
    %97 = vmatmul.mubr.f32.gmra.mxu0 %v15
    %v98 = vpop.f32.mrf.mxu0
    %v99 = vadd.f32 0.0, %v98
    %v100 = vpop.f32.mrf.mxu0
    %101 = vdwg.mxu0
    %p102 = scmp.eq.s32.totalorder 0, 0
    // Predicated region
    $region14: #{my_linear.1} parent=1 // pred_check
      %p103 = pneg %p102
    $region15: #{my_linear.1} parent=1 // pred_check_branch
      %105 = sbr.rel (%p103) target = $region17
    $region16: #{my_linear.1} parent=1 // pred_region
      %106 = vst [vmem:[#allocation2] sm:$0xff] %v99
    $region17: #{my_linear.1} parent=1 // pred_fallthru
      _
    %p107 = scmp.gt.s32.totalorder 0, 0
    // Predicated region
    $region18: #{my_linear.1} parent=1 // pred_check
      %p108 = pneg %p107
    $region19: #{my_linear.1} parent=1 // pred_check_branch
      %110 = sbr.rel (%p108) target = $region21
    $region20: #{my_linear.1} parent=1 // pred_region
      %v111 = vld [vmem:[#allocation2] sm:$0xff]
      %v112 = vadd.f32 %v111, %v99
      %113 = vst [vmem:[#allocation2] sm:$0xff] %v112
    $region21: #{my_linear.1} parent=1 // pred_fallthru
      _
    // Predicated region
    $region22: #{my_linear.1} parent=1 // pred_check
      %p114 = pneg %p102
    $region23: #{my_linear.1} parent=1 // pred_check_branch
      %116 = sbr.rel (%p114) target = $region25
    $region24: #{my_linear.1} parent=1 // pred_region
      %v117 = vld [vmem:[#allocation2] sm:$0xff]
      %v118 = vld [vmem:[%s2] sm:$0x1]
      %v120 = vlaneseq
      %v121 = vshrl.u32 %v120, 7
      %v122 = vsub.s32 0, %v121
      %v123 = vrot.slane %v118, %v122
      %v125 = vadd.f32 %v117, %v123
      %v126 = vmax.f32 %v125, 0.0
      %127 = vst [vmem:[#allocation2] sm:$0xff] %v126
    $region25: #{my_linear.1} parent=1 // pred_fallthru
      _
    // Predicated region
    $region26: #{my_linear.1} parent=1 // pred_check
      _
    $region27: #{my_linear.1} parent=1 // pred_check_branch
      %129 = sbr.rel (0) target = $region29
    $region28: #{my_linear.1} parent=1 // pred_region
      %s131 = ssub.s32 128, 128
      %132 = vsyncadd [#allocation3], %s131
      %s134 = sshll.u32 [#allocation2], 4
      %s135 = int_to_ptr.vmem [resolvable:$true] %s134
      %137 = dma.vmem_to_hbm [thread:$0]  %s135, 128, %s3, [#allocation3]
    $region29: #{my_linear.1} parent=1 // pred_fallthru
      _
    // Predicated region
    $region30: #{my_linear.1} parent=1 // pred_check
      _
    $region31: #{my_linear.1} parent=1 // pred_check_branch
      %139 = sbr.rel (0) target = $region33
    $region32: #{my_linear.1} parent=1 // pred_region
      %140 = dma.done [#allocation3], 128
    $region33: #{my_linear.1} parent=1 // pred_fallthru
      _
    %141 = vsyncpa [#allocation3], 1

</llo_original>
